<compile_context>
chip_gen: v7x
topology: tpu7x:2x2x1
jax: 0.10.0
libtpu: 0.0.40
codegen_flags: <defaults>
</compile_context>

<pallas_src>
import functools

import jax
import jax.numpy as jnp
from jax.experimental import pallas as pl
from jax.experimental.pallas import tpu as pltpu

ALPHA = 0.7
BETA = 0.3
GAMMA = 4.0 / 3.0
SMOOTH = 1.0

_LANES = 128
_BLOCK_ROWS = 8192                 # 8192 x 128 f32 = 4 MiB per input per buffer
_VMEM_LIMIT_BYTES = 40 * 1024 * 1024


def _round_up(x, m):
    return -(-x // m) * m


def _ftl_partials_kernel(logits_ref, targets_ref, out_ref, *,
                         block_rows, total_rows, needs_mask):
    """Per-block partial sums: out[0] = [fold(p*t), fold(p), fold(t)] as (3,8,128)."""
    i = pl.program_id(0)

    probs = jax.nn.sigmoid(logits_ref[...].astype(jnp.float32))   # (block_rows, 128)
    t = targets_ref[...].astype(jnp.float32)

    def store(p, tt):
        pt = p * tt
        # Pure-VPU fold over the leading axis -> (8, 128) partial slabs.
        # The (R,128)->(R/8,8,128) reshape is layout-identical on TPU.
        out_ref[0, 0] = jnp.sum(pt.reshape(-1, 8, _LANES), axis=0)   # tp partial
        out_ref[0, 1] = jnp.sum(p.reshape(-1, 8, _LANES), axis=0)    # sum(probs)
        out_ref[0, 2] = jnp.sum(tt.reshape(-1, 8, _LANES), axis=0)   # sum(targets)

    if not needs_mask:
        store(probs, t)
    else:
        last = pl.num_programs(0) - 1

        @pl.when(i != last)
        def _():
            store(probs, t)

        @pl.when(i == last)
        def _():
            # Row-granularity mask for the ragged final block only.  Also zeroes
            # sigmoid(garbage) from the undefined OOB region of the block.
            rid = jax.lax.broadcasted_iota(jnp.int32, probs.shape, 0)
            valid = (i * block_rows + rid) < total_rows
            store(jnp.where(valid, probs, 0.0), jnp.where(valid, t, 0.0))


def classifier_focal_tversky_loss(logits, targets, *,
                                  alpha=ALPHA, beta=BETA,
                                  gamma=GAMMA, smooth=SMOOTH):
    """Returns a scalar float32 loss, matching the PyTorch forward."""
    l_flat = jnp.ravel(logits)        # free (bitcast) for contiguous inputs
    t_flat = jnp.ravel(targets)
    n = l_flat.shape[0]

    rows = n // _LANES
    n_main = rows * _LANES
    n_tail = n - n_main

    tp = jnp.float32(0.0)
    sum_p = jnp.float32(0.0)
    sum_t = jnp.float32(0.0)

    if rows > 0:
        if n_tail == 0:
            l2d = l_flat.reshape(rows, _LANES)       # free bitcast view, no pad
            t2d = t_flat.reshape(rows, _LANES)
        else:
            # Rare: numel not a multiple of 128.  The prefix slice materializes
            # one copy; the <128-element tail is handled in plain JAX below.
            l2d = l_flat[:n_main].reshape(rows, _LANES)
            t2d = t_flat[:n_main].reshape(rows, _LANES)

        # Dtype-aware sublane multiple so narrow storage dtypes (bf16/int8/bool)
        # keep dense DMA / vreg packing.
        min_itemsize = min(jnp.dtype(l2d.dtype).itemsize,
                           jnp.dtype(t2d.dtype).itemsize)
        min_itemsize = max(1, min(4, int(min_itemsize)))
        sub_mult = 8 * (4 // min_itemsize)           # 8 / 16 / 32

        block_rows = min(_BLOCK_ROWS, _round_up(rows, sub_mult))
        num_blocks = pl.cdiv(rows, block_rows)
        needs_mask = (num_blocks * block_rows) != rows

        kernel = functools.partial(_ftl_partials_kernel,
                                   block_rows=block_rows,
                                   total_rows=rows,
                                   needs_mask=needs_mask)

        partials = pl.pallas_call(
            kernel,
            out_shape=jax.ShapeDtypeStruct((num_blocks, 3, 8, _LANES),
                                           jnp.float32),
            grid_spec=pltpu.PrefetchScalarGridSpec(
                num_scalar_prefetch=0,
                grid=(num_blocks,),
                in_specs=[
                    pl.BlockSpec((block_rows, _LANES), lambda i: (i, 0)),
                    pl.BlockSpec((block_rows, _LANES), lambda i: (i, 0)),
                ],
                out_specs=pl.BlockSpec((1, 3, 8, _LANES),
                                       lambda i: (i, 0, 0, 0)),
            ),
            # TODO(synk): on v7x, if xprof shows a single TensorCore in use,
            # switch this grid axis to pltpu.CORE_PARALLEL (per-block outputs
            # are disjoint, so sharding across both TCs is safe).
            compiler_params=pltpu.CompilerParams(
                dimension_semantics=("parallel",),
                vmem_limit_bytes=_VMEM_LIMIT_BYTES),
        )(l2d, t2d)

        # Tiny finalization on the partial slabs (negligible vs. the main pass).
        sums = jnp.sum(partials, axis=(0, 2, 3))     # (3,) float32
        tp, sum_p, sum_t = sums[0], sums[1], sums[2]

    if n_tail:
        # <128-element tail, reduced in plain JAX (negligible work / traffic).
        pt_tail = jax.nn.sigmoid(l_flat[n_main:].astype(jnp.float32))
        tt_tail = t_flat[n_main:].astype(jnp.float32)
        tp = tp + jnp.sum(pt_tail * tt_tail)
        sum_p = sum_p + jnp.sum(pt_tail)
        sum_t = sum_t + jnp.sum(tt_tail)

    fn = sum_t - tp
    fp = sum_p - tp
    tversky = (tp + smooth) / (tp + alpha * fn + beta * fp + smooth)
    # max(..., 0) only differs from the PyTorch reference if rounding pushes
    # tversky infinitesimally above 1 (reference would NaN); intentional/benign.
    return jnp.maximum(1.0 - tversky, 0.0) ** gamma


def _reference(logits, targets, *, alpha=ALPHA, beta=BETA,
               gamma=GAMMA, smooth=SMOOTH):
    probs = jax.nn.sigmoid(logits.astype(jnp.float32))
    t = targets.astype(jnp.float32)
    tp = jnp.sum(probs * t)
    fn = jnp.sum((1.0 - probs) * t)
    fp = jnp.sum(probs * (1.0 - t))
    tversky = (tp + smooth) / (tp + alpha * fn + beta * fp + smooth)
    return (1.0 - tversky) ** gamma


if __name__ == "__main__":
    key = jax.random.PRNGKey(0)
    k1, k2 = jax.random.split(key)
    # Classifier-style logits/targets over an NCHW-shaped prediction map.
    x_shape = (2, 4, 16, 16)
    logits = jax.random.normal(k1, x_shape, dtype=jnp.float32)
    targets = (jax.random.uniform(k2, x_shape) > 0.8).astype(jnp.float32)

    loss = classifier_focal_tversky_loss(logits, targets)
    loss = jax.block_until_ready(loss)

    ref = _reference(logits, targets)
    assert jnp.allclose(loss, ref, rtol=1e-5, atol=1e-6), (loss, ref)
    print("KERNEL_OK")
</pallas_src>

<mosaic_0001>
module attributes {stable_mosaic.version = 11 : i64} {
  func.func @_ftl_partials_kernel(%arg0: i32, %arg1: memref<16x128xf32, #tpu.memory_space<vmem>>, %arg2: memref<16x128xf32, #tpu.memory_space<vmem>>, %arg3: memref<1x3x8x128xf32, #tpu.memory_space<vmem>>) attributes {dimension_semantics = [#tpu.dimension_semantics<parallel>], iteration_bounds = array<i64: 1>, scalar_prefetch = 0 : i64, scratch_operands = 0 : i64, tpu.core_type = #tpu.core_type<tc>, window_params = [{transform_indices = @transform_0, window_bounds = array<i64: 16, 128>}, {transform_indices = @transform_1, window_bounds = array<i64: 16, 128>}, {transform_indices = @transform_2, window_bounds = array<i64: 1, 3, 8, 128>}]} {
    %c0 = arith.constant 0 : index
    %c0_0 = arith.constant 0 : index
    %0 = vector.load %arg1[%c0, %c0_0] : memref<16x128xf32, #tpu.memory_space<vmem>>, vector<16x128xf32>
    %1 = arith.negf %0 : vector<16x128xf32>
    %2 = math.exp %1 : vector<16x128xf32>
    %cst = arith.constant 1.000000e+00 : f32
    %3 = vector.broadcast %cst : f32 to vector<16x128xf32>
    %4 = arith.addf %3, %2 : vector<16x128xf32>
    %5 = arith.divf %3, %4 : vector<16x128xf32>
    %c0_1 = arith.constant 0 : index
    %c0_2 = arith.constant 0 : index
    %6 = vector.load %arg2[%c0_1, %c0_2] : memref<16x128xf32, #tpu.memory_space<vmem>>, vector<16x128xf32>
    %7 = arith.mulf %5, %6 : vector<16x128xf32>
    %8 = vector.shape_cast %7 : vector<16x128xf32> to vector<2x8x128xf32>
    %cst_3 = arith.constant dense<0.000000e+00> : vector<8x128xf32>
    %9 = vector.multi_reduction <add>, %8, %cst_3 [0] : vector<2x8x128xf32> to vector<8x128xf32>
    %c0_4 = arith.constant 0 : index
    %c0_5 = arith.constant 0 : index
    %c0_6 = arith.constant 0 : index
    %c0_7 = arith.constant 0 : index
    %10 = vector.load %arg3[%c0_4, %c0_5, %c0_6, %c0_7] : memref<1x3x8x128xf32, #tpu.memory_space<vmem>>, vector<1x1x8x128xf32>
    %11 = vector.shape_cast %10 : vector<1x1x8x128xf32> to vector<8x128xf32>
    %12 = vector.shape_cast %9 : vector<8x128xf32> to vector<1x1x8x128xf32>
    tpu.vector_store %arg3[%c0_4, %c0_5, %c0_6, %c0_7], %12 {strides = array<i32>} : memref<1x3x8x128xf32, #tpu.memory_space<vmem>>, vector<1x1x8x128xf32>,
    %13 = vector.shape_cast %5 : vector<16x128xf32> to vector<2x8x128xf32>
    %cst_8 = arith.constant dense<0.000000e+00> : vector<8x128xf32>
    %14 = vector.multi_reduction <add>, %13, %cst_8 [0] : vector<2x8x128xf32> to vector<8x128xf32>
    %c0_9 = arith.constant 0 : index
    %c1 = arith.constant 1 : index
    %c0_10 = arith.constant 0 : index
    %c0_11 = arith.constant 0 : index
    %15 = vector.load %arg3[%c0_9, %c1, %c0_10, %c0_11] : memref<1x3x8x128xf32, #tpu.memory_space<vmem>>, vector<1x1x8x128xf32>
    %16 = vector.shape_cast %15 : vector<1x1x8x128xf32> to vector<8x128xf32>
    %17 = vector.shape_cast %14 : vector<8x128xf32> to vector<1x1x8x128xf32>
    tpu.vector_store %arg3[%c0_9, %c1, %c0_10, %c0_11], %17 {strides = array<i32>} : memref<1x3x8x128xf32, #tpu.memory_space<vmem>>, vector<1x1x8x128xf32>,
    %18 = vector.shape_cast %6 : vector<16x128xf32> to vector<2x8x128xf32>
    %cst_12 = arith.constant dense<0.000000e+00> : vector<8x128xf32>
    %19 = vector.multi_reduction <add>, %18, %cst_12 [0] : vector<2x8x128xf32> to vector<8x128xf32>
    %c0_13 = arith.constant 0 : index
    %c2 = arith.constant 2 : index
    %c0_14 = arith.constant 0 : index
    %c0_15 = arith.constant 0 : index
    %20 = vector.load %arg3[%c0_13, %c2, %c0_14, %c0_15] : memref<1x3x8x128xf32, #tpu.memory_space<vmem>>, vector<1x1x8x128xf32>
    %21 = vector.shape_cast %20 : vector<1x1x8x128xf32> to vector<8x128xf32>
    %22 = vector.shape_cast %19 : vector<8x128xf32> to vector<1x1x8x128xf32>
    tpu.vector_store %arg3[%c0_13, %c2, %c0_14, %c0_15], %22 {strides = array<i32>} : memref<1x3x8x128xf32, #tpu.memory_space<vmem>>, vector<1x1x8x128xf32>,
    return
  }
  func.func @transform_0(%arg0: i32) -> (i32, i32) {
    %c0_i32 = arith.constant 0 : i32
    %c0_i32_0 = arith.constant 0 : i32
    return %arg0, %c0_i32 : i32, i32
  }
  func.func @transform_1(%arg0: i32) -> (i32, i32) {
    %c0_i32 = arith.constant 0 : i32
    %c0_i32_0 = arith.constant 0 : i32
    return %arg0, %c0_i32 : i32, i32
  }
  func.func @transform_2(%arg0: i32) -> (i32, i32, i32, i32) {
    %c0_i32 = arith.constant 0 : i32
    %c0_i32_0 = arith.constant 0 : i32
    %c0_i32_1 = arith.constant 0 : i32
    %c0_i32_2 = arith.constant 0 : i32
    return %arg0, %c0_i32, %c0_i32_0, %c0_i32_1 : i32, i32, i32, i32
  }
}

</mosaic_0001>

<llo_original>
// kernel: tpu_custom_call.1
$region0: #{tpu_custom_call.1}
  #allocation0 [shape = 'u32[]', space=smem, size = 0x4, offset = 0x4, fixed_abs, tag = 'smem constant byte address 0x4 - core index']
  #allocation1 [shape = 'u32[144,128]{1,0:T(1,128)}', space=vmem, size = 0x12000, scoped, tag = 'internal scratch']
  %s0 = inlined_call_operand.hbm [shape: f32[16,128], index: 0, kind: input, shape index: {}]
  %s1 = inlined_call_operand.hbm [shape: f32[16,128], index: 1, kind: input, shape index: {}]
  %s2 = inlined_call_operand.hbm [shape: f32[1,3,8,128], index: 2, kind: output, shape index: {}]
  %s3 = sld [smem:[#allocation0]]
  $region26: #{tpu_custom_call.1} parent=0
    _
  %s5 = ssub.s32 1, %s3
  %s6 = scalar_select 0, %s5, %s3
  $region1: #{tpu_custom_call.1} parent=0
    #allocation2 [shape = 'u8[8192]{0}', space=vmem, size = 0x2000, scoped, tag = 'input window, operand 0, single buffered']
    #allocation3 [shape = 's32[1]{0}', space=sflag, size = 0x4, scoped, tag = 'scoped memory for tpu_custom_call.1']
    #allocation4 [shape = 's32[1]{0}', space=sflag, size = 0x4, scoped, tag = 'scoped memory for tpu_custom_call.1']
    #allocation5 [shape = 'u8[8192]{0}', space=vmem, size = 0x2000, scoped, tag = 'input window, operand 1, single buffered']
    #allocation6 [shape = 's32[1]{0}', space=sflag, size = 0x4, scoped, tag = 'scoped memory for tpu_custom_call.1']
    #allocation7 [shape = 'u8[12288]{0}', space=vmem, size = 0x3000, scoped, tag = 'output window, operand 0, single buffered']
    %7 = vsyncpa [#allocation3], 0
    %8 = vsyncpa [#allocation6], 0
    %9 = vsyncpa [#allocation4], 0
    // Predicated region
    $region2: #{tpu_custom_call.1} parent=1 // pred_check
      _
    $region3: #{tpu_custom_call.1} parent=1 // pred_check_branch
      %11 = sbr.rel (0) target = $region5
    $region4: #{tpu_custom_call.1} parent=1 // pred_region
      %s13 = ssub.s32 256, 256
      %14 = vsyncadd [#allocation3], %s13
      %s15 = sshll.u32 [#allocation2], 4
      %s16 = int_to_ptr.vmem [resolvable:$true] %s15
      %21 = dma.hbm_to_vmem [thread:$0]  %s0, 256, %s16, [#allocation3], 128, 128, 8
    $region5: #{tpu_custom_call.1} parent=1 // pred_fallthru
      _
    // Predicated region
    $region6: #{tpu_custom_call.1} parent=1 // pred_check
      _
    $region7: #{tpu_custom_call.1} parent=1 // pred_check_branch
      %23 = sbr.rel (0) target = $region9
    $region8: #{tpu_custom_call.1} parent=1 // pred_region
      %s25 = ssub.s32 256, 256
      %26 = vsyncadd [#allocation6], %s25
      %s27 = sshll.u32 [#allocation5], 4
      %s28 = int_to_ptr.vmem [resolvable:$true] %s27
      %33 = dma.hbm_to_vmem [thread:$0]  %s1, 256, %s28, [#allocation6], 128, 128, 8
    $region9: #{tpu_custom_call.1} parent=1 // pred_fallthru
      _
    // Predicated region
    $region10: #{tpu_custom_call.1} parent=1 // pred_check
      _
    $region11: #{tpu_custom_call.1} parent=1 // pred_check_branch
      %35 = sbr.rel (0) target = $region13
    $region12: #{tpu_custom_call.1} parent=1 // pred_region
      %36 = dma.done [#allocation3], 256
    $region13: #{tpu_custom_call.1} parent=1 // pred_fallthru
      _
    // Predicated region
    $region14: #{tpu_custom_call.1} parent=1 // pred_check
      _
    $region15: #{tpu_custom_call.1} parent=1 // pred_check_branch
      %38 = sbr.rel (0) target = $region17
    $region16: #{tpu_custom_call.1} parent=1 // pred_region
      %39 = dma.done [#allocation6], 256
    $region17: #{tpu_custom_call.1} parent=1 // pred_fallthru
      _
    %v40 = vld [vmem:[#allocation2] sm:$0xff]
    %v41 = vld [vmem:[#allocation2 + $0x8] sm:$0xff]
    %v42 = vxor.u32 %v40, 2147483648
    %v43 = vxor.u32 %v41, 2147483648
    %v44 = vmul.f32 %v42, 1.442695
    %v45 = vpow.pop %v44
    %v46 = vmul.f32 %v43, 1.442695
    %v47 = vpow.pop %v46
    %v48 = vadd.f32 %v45, 1.0
    %v49 = vadd.f32 %v47, 1.0
    %v50 = vrcp.pop %v48
    %v51 = vmul.f32 1.0, %v50
    %v52 = vrcp.pop %v49
    %v53 = vmul.f32 1.0, %v52
    %v54 = vld [vmem:[#allocation5] sm:$0xff]
    %v55 = vld [vmem:[#allocation5 + $0x8] sm:$0xff]
    %v56 = vmul.f32 %v51, %v54
    %v57 = vmul.f32 %v53, %v55
    %v58 = vadd.f32 %v56, %v57
    %59 = vst [vmem:[#allocation7] sm:$0xff] %v58
    %v60 = vadd.f32 %v51, %v53
    %s61 = scalar_lea.vmem [#allocation7], 8
    %62 = vst [vmem:[%s61] sm:$0xff] %v60
    %v63 = vadd.f32 %v54, %v55
    %s64 = scalar_lea.vmem [#allocation7], 16
    %65 = vst [vmem:[%s64] sm:$0xff] %v63
    // Predicated region
    $region18: #{tpu_custom_call.1} parent=1 // pred_check
      _
    $region19: #{tpu_custom_call.1} parent=1 // pred_check_branch
      %67 = sbr.rel (0) target = $region21
    $region20: #{tpu_custom_call.1} parent=1 // pred_region
      %s69 = ssub.s32 384, 384
      %70 = vsyncadd [#allocation4], %s69
      %s71 = sshll.u32 [#allocation7], 4
      %s72 = int_to_ptr.vmem [resolvable:$true] %s71
      %77 = dma.vmem_to_hbm [thread:$0]  %s72, 384, %s2, [#allocation4], 128, 128, 8
    $region21: #{tpu_custom_call.1} parent=1 // pred_fallthru
      _
    // Predicated region
    $region22: #{tpu_custom_call.1} parent=1 // pred_check
      _
    $region23: #{tpu_custom_call.1} parent=1 // pred_check_branch
      %79 = sbr.rel (0) target = $region25
    $region24: #{tpu_custom_call.1} parent=1 // pred_region
      %80 = dma.done [#allocation4], 384
    $region25: #{tpu_custom_call.1} parent=1 // pred_fallthru
      _
    %81 = vsyncpa [#allocation3], 1
    %82 = vsyncpa [#allocation6], 1
    %83 = vsyncpa [#allocation4], 1

</llo_original>
